<compile_context>
chip_gen: v5e
topology: v5e:2x2
jax: 0.10.0
libtpu: 0.0.40
codegen_flags: <defaults>
</compile_context>

<pallas_src>
import functools

import jax
import jax.numpy as jnp
from jax.experimental import pallas as pl
from jax.experimental.pallas import tpu as pltpu


def lm_lstm_kernel(hi_ref, wih_ref, bias_ref, why_ref, bhy_ref, y_ref, h_ref):
    """Grid axis 0 tiles the vocab dimension of the output projection.

    hi_ref  : (B, E)   bf16  embedded tokens (grid-invariant block)
    wih_ref : (E, 3E)  bf16  input->gates weights, gate order [i, g, o]
    bias_ref: (1, 3E)  f32   b_ih + b_hh, gate order [i, g, o]
    why_ref : (E, TN)  bf16  hidden->vocab weight tile
    bhy_ref : (1, TN)  f32   output-bias tile
    y_ref   : (B, TN)  f32   logits tile
    h_ref   : (B, E)   bf16  VMEM scratch holding the LSTM hidden state
    """
    e = hi_ref.shape[1]

    # Compute the LSTM cell once; every vocab tile reuses h from scratch.
    @pl.when(pl.program_id(0) == 0)
    def _():
        gates = (
            jnp.dot(hi_ref[...], wih_ref[...], preferred_element_type=jnp.float32)
            + bias_ref[...]
        )
        i_g = jax.nn.sigmoid(gates[:, 0 * e:1 * e])
        g_g = jnp.tanh(gates[:, 1 * e:2 * e])
        o_g = jax.nn.sigmoid(gates[:, 2 * e:3 * e])
        c = i_g * g_g                      # f*c0 == 0 (zero initial state)
        h = o_g * jnp.tanh(c)
        h_ref[...] = h.astype(h_ref.dtype)

    # Per-tile output projection (dominant, weight-streaming matmul).
    y_ref[...] = (
        jnp.dot(h_ref[...], why_ref[...], preferred_element_type=jnp.float32)
        + bhy_ref[...]
    )


def language_model_lstm_forward(word, kparams, *, tile_n=512):
    """word: int32 [B] token ids. Returns logits [B, V] (float32)."""
    embed = kparams["embed"]        # (V, E) f32
    w_igo_t = kparams["w_igo_t"]    # (E, 3E) bf16
    b_igo = kparams["b_igo"]        # (1, 3E) f32
    w_hy_t = kparams["w_hy_t"]      # (E, V) bf16
    b_hy = kparams["b_hy"]          # (1, V) f32

    # Embedding lookup = gather (indexing glue, plain JAX); stream hi as bf16.
    hi = jnp.take(embed, word, axis=0).astype(w_igo_t.dtype)   # (B, E)

    B, E = hi.shape
    G = w_igo_t.shape[1]            # 3E
    V = w_hy_t.shape[1]

    # Pad batch to a multiple of 8 sublanes.
    Bp = max(8, 8 * pl.cdiv(B, 8))
    if Bp != B:
        hi = jnp.pad(hi, ((0, Bp - B), (0, 0)))

    # Vocab tile width: lane-dense multiple of 128; pad V up to it.
    tn = min(tile_n, V)
    tn = max(128, 128 * (tn // 128))
    Vp = tn * pl.cdiv(V, tn)
    if Vp != V:
        w_hy_t = jnp.pad(w_hy_t, ((0, 0), (0, Vp - V)))
        b_hy = jnp.pad(b_hy, ((0, 0), (0, Vp - V)))

    grid = (Vp // tn,)

    y = pl.pallas_call(
        lm_lstm_kernel,
        out_shape=jax.ShapeDtypeStruct((Bp, Vp), jnp.float32),
        grid_spec=pltpu.PrefetchScalarGridSpec(
            num_scalar_prefetch=0,
            grid=grid,
            in_specs=[
                pl.BlockSpec((Bp, E), lambda j: (0, 0)),   # hi (resident)
                pl.BlockSpec((E, G), lambda j: (0, 0)),    # W_igo^T (resident)
                pl.BlockSpec((1, G), lambda j: (0, 0)),    # bias (resident)
                pl.BlockSpec((E, tn), lambda j: (0, j)),   # W_hy^T tile (streamed)
                pl.BlockSpec((1, tn), lambda j: (0, j)),   # b_hy tile
            ],
            out_specs=pl.BlockSpec((Bp, tn), lambda j: (0, j)),
            scratch_shapes=[pltpu.VMEM((Bp, E), w_igo_t.dtype)],
        ),
        # "arbitrary": the h scratch is initialized on grid step 0 and reused,
        # so the vocab axis must run sequentially on one core.
        compiler_params=pltpu.CompilerParams(
            dimension_semantics=("arbitrary",),
        ),
    )(hi, w_igo_t, b_igo, w_hy_t, b_hy)

    return y[:B, :V]


def make_params(vocab_size, embed_size, key):
    """Deterministic synthetic parameters in PyTorch layout (float32)."""
    k = jax.random.split(key, 6)
    scale = 1.0 / jnp.sqrt(embed_size)
    embed = jax.random.normal(k[0], (vocab_size, embed_size), jnp.float32)
    w_ih = jax.random.uniform(k[1], (4 * embed_size, embed_size), jnp.float32,
                              -scale, scale)                 # (4E, E)
    b_ih = jax.random.uniform(k[2], (4 * embed_size,), jnp.float32, -scale, scale)
    b_hh = jax.random.uniform(k[3], (4 * embed_size,), jnp.float32, -scale, scale)
    w_hy = jax.random.uniform(k[4], (vocab_size, embed_size), jnp.float32,
                              -scale, scale)                 # (V, E)
    b_hy = jax.random.uniform(k[5], (vocab_size,), jnp.float32, -scale, scale)
    return {"embed": embed, "w_ih": w_ih, "b_ih": b_ih, "b_hh": b_hh,
            "w_hy": w_hy, "b_hy": b_hy}


def prepare_kernel_params(params, weight_dtype=jnp.bfloat16):
    """Fold/transpose/cast PyTorch-layout params into the kernel layout.

    - Drops the forget-gate rows (c0 == 0 so f*c0 vanishes): keeps [i, g, o].
    - Pre-adds b_ih + b_hh.
    - Transposes weights to (in, out) and casts them to bf16 for streaming.
    """
    w_ih = params["w_ih"]
    E = w_ih.shape[1]
    # PyTorch gate order along rows: [i | f | g | o]; keep i, g, o.
    w_igo = jnp.concatenate([w_ih[0:E], w_ih[2 * E:4 * E]], axis=0)   # (3E, E)
    b_sum = params["b_ih"] + params["b_hh"]
    b_igo = jnp.concatenate([b_sum[0:E], b_sum[2 * E:4 * E]], axis=0)  # (3E,)
    return {
        "embed": params["embed"],                                   # (V, E) f32
        "w_igo_t": w_igo.T.astype(weight_dtype),                    # (E, 3E) bf16
        "b_igo": b_igo.reshape(1, -1).astype(jnp.float32),          # (1, 3E) f32
        "w_hy_t": params["w_hy"].T.astype(weight_dtype),            # (E, V) bf16
        "b_hy": params["b_hy"].reshape(1, -1).astype(jnp.float32),  # (1, V) f32
    }


def reference_forward(word, params):
    """Pure-JAX f32 reference mirroring the PyTorch module exactly."""
    hi = jnp.take(params["embed"], word, axis=0)
    E = hi.shape[1]
    gates = hi @ params["w_ih"].T + params["b_ih"] + params["b_hh"]
    i = jax.nn.sigmoid(gates[:, 0 * E:1 * E])
    f = jax.nn.sigmoid(gates[:, 1 * E:2 * E])
    g = jnp.tanh(gates[:, 2 * E:3 * E])
    o = jax.nn.sigmoid(gates[:, 3 * E:4 * E])
    c = f * 0.0 + i * g          # c0 == 0
    h = o * jnp.tanh(c)
    return h @ params["w_hy"].T + params["b_hy"]


if __name__ == "__main__":
    # Small shapes consistent with the module (lane-aligned embed size).
    VOCAB = 256
    EMBED = 128
    BATCH = 8

    key = jax.random.PRNGKey(0)
    k_param, k_word = jax.random.split(key)

    params = make_params(VOCAB, EMBED, k_param)
    kparams = prepare_kernel_params(params)
    word = jax.random.randint(k_word, (BATCH,), 0, VOCAB, dtype=jnp.int32)

    # tile_n=128 exercises the vocab grid (2 tiles at V=256).
    fwd = jax.jit(functools.partial(language_model_lstm_forward, tile_n=128))
    y = jax.block_until_ready(fwd(word, kparams))

    y_ref = reference_forward(word, params)
    assert y.shape == (BATCH, VOCAB)
    max_err = float(jnp.max(jnp.abs(y - y_ref)))
    # bf16 weight streaming => loosen tolerance vs the f32 reference.
    assert jnp.allclose(y, y_ref, atol=3e-2, rtol=3e-2), f"max abs err {max_err}"

    print("KERNEL_OK")
</pallas_src>

<mosaic_0001>
module attributes {stable_mosaic.version = 11 : i64} {
  func.func @lm_lstm_kernel(%arg0: i32, %arg1: memref<8x128xbf16, #tpu.memory_space<vmem>>, %arg2: memref<128x384xbf16, #tpu.memory_space<vmem>>, %arg3: memref<1x384xf32, #tpu.memory_space<vmem>>, %arg4: memref<128x128xbf16, #tpu.memory_space<vmem>>, %arg5: memref<1x128xf32, #tpu.memory_space<vmem>>, %arg6: memref<8x128xf32, #tpu.memory_space<vmem>>, %arg7: memref<8x128xbf16, #tpu.memory_space<vmem>>) attributes {dimension_semantics = [#tpu.dimension_semantics<arbitrary>], iteration_bounds = array<i64: 2>, scalar_prefetch = 0 : i64, scratch_operands = 1 : i64, tpu.core_type = #tpu.core_type<tc>, window_params = [{pipeline_mode = #tpu.pipeline_mode<synchronous>, transform_indices = @transform_0, window_bounds = array<i64: 8, 128>}, {pipeline_mode = #tpu.pipeline_mode<synchronous>, transform_indices = @transform_1, window_bounds = array<i64: 128, 384>}, {pipeline_mode = #tpu.pipeline_mode<synchronous>, transform_indices = @transform_2, window_bounds = array<i64: 1, 384>}, {transform_indices = @transform_3, window_bounds = array<i64: 128, 128>}, {transform_indices = @transform_4, window_bounds = array<i64: 1, 128>}, {transform_indices = @transform_5, window_bounds = array<i64: 8, 128>}]} {
    %c0_i32 = arith.constant 0 : i32
    %0 = arith.cmpi eq, %arg0, %c0_i32 : i32
    %1 = arith.extui %0 : i1 to i32
    %c0_i32_0 = arith.constant 0 : i32
    %2 = arith.cmpi ne, %1, %c0_i32_0 : i32
    scf.if %2 {
      %c0_8 = arith.constant 0 : index
      %c0_9 = arith.constant 0 : index
      %10 = vector.load %arg1[%c0_8, %c0_9] : memref<8x128xbf16, #tpu.memory_space<vmem>>, vector<8x128xbf16>
      %c0_10 = arith.constant 0 : index
      %c0_11 = arith.constant 0 : index
      %11 = vector.load %arg2[%c0_10, %c0_11] : memref<128x384xbf16, #tpu.memory_space<vmem>>, vector<128x384xbf16>
      %cst_12 = arith.constant dense<0.000000e+00> : vector<8x384xf32>
      %12 = tpu.matmul %10, %11, %cst_12 {dimension_numbers = #tpu.dot_dimension_numbers<[1], [0], [0], [1], [0, 0, 1, 1], [], []>} : vector<8x128xbf16>, vector<128x384xbf16>, vector<8x384xf32> -> vector<8x384xf32>
      %c0_13 = arith.constant 0 : index
      %c0_14 = arith.constant 0 : index
      %13 = vector.load %arg3[%c0_13, %c0_14] : memref<1x384xf32, #tpu.memory_space<vmem>>, vector<1x384xf32>
      %14 = vector.broadcast %13 : vector<1x384xf32> to vector<8x384xf32>
      %15 = arith.addf %12, %14 : vector<8x384xf32>
      %16 = vector.extract_strided_slice %15 {offsets = [0, 0], sizes = [8, 128], strides = [1, 1]} : vector<8x384xf32> to vector<8x128xf32>
      %17 = arith.negf %16 : vector<8x128xf32>
      %18 = math.exp %17 : vector<8x128xf32>
      %cst_15 = arith.constant 1.000000e+00 : f32
      %19 = vector.broadcast %cst_15 : f32 to vector<8x128xf32>
      %20 = arith.addf %19, %18 : vector<8x128xf32>
      %21 = arith.divf %19, %20 : vector<8x128xf32>
      %22 = vector.extract_strided_slice %15 {offsets = [0, 128], sizes = [8, 128], strides = [1, 1]} : vector<8x384xf32> to vector<8x128xf32>
      %23 = math.tanh %22 : vector<8x128xf32>
      %24 = vector.extract_strided_slice %15 {offsets = [0, 256], sizes = [8, 128], strides = [1, 1]} : vector<8x384xf32> to vector<8x128xf32>
      %25 = arith.negf %24 : vector<8x128xf32>
      %26 = math.exp %25 : vector<8x128xf32>
      %cst_16 = arith.constant 1.000000e+00 : f32
      %27 = vector.broadcast %cst_16 : f32 to vector<8x128xf32>
      %28 = arith.addf %27, %26 : vector<8x128xf32>
      %29 = arith.divf %27, %28 : vector<8x128xf32>
      %30 = arith.mulf %21, %23 : vector<8x128xf32>
      %31 = math.tanh %30 : vector<8x128xf32>
      %32 = arith.mulf %29, %31 : vector<8x128xf32>
      %33 = arith.truncf %32 : vector<8x128xf32> to vector<8x128xbf16>
      %c0_17 = arith.constant 0 : index
      %c0_18 = arith.constant 0 : index
      %34 = vector.load %arg7[%c0_17, %c0_18] : memref<8x128xbf16, #tpu.memory_space<vmem>>, vector<8x128xbf16>
      tpu.vector_store %arg7[%c0_17, %c0_18], %33 {strides = array<i32>} : memref<8x128xbf16, #tpu.memory_space<vmem>>, vector<8x128xbf16>,
    } else {
    }
    %c0 = arith.constant 0 : index
    %c0_1 = arith.constant 0 : index
    %3 = vector.load %arg7[%c0, %c0_1] : memref<8x128xbf16, #tpu.memory_space<vmem>>, vector<8x128xbf16>
    %c0_2 = arith.constant 0 : index
    %c0_3 = arith.constant 0 : index
    %4 = vector.load %arg4[%c0_2, %c0_3] : memref<128x128xbf16, #tpu.memory_space<vmem>>, vector<128x128xbf16>
    %cst = arith.constant dense<0.000000e+00> : vector<8x128xf32>
    %5 = tpu.matmul %3, %4, %cst {dimension_numbers = #tpu.dot_dimension_numbers<[1], [0], [0], [1], [0, 0, 1, 1], [], []>} : vector<8x128xbf16>, vector<128x128xbf16>, vector<8x128xf32> -> vector<8x128xf32>
    %c0_4 = arith.constant 0 : index
    %c0_5 = arith.constant 0 : index
    %6 = vector.load %arg5[%c0_4, %c0_5] : memref<1x128xf32, #tpu.memory_space<vmem>>, vector<1x128xf32>
    %7 = vector.broadcast %6 : vector<1x128xf32> to vector<8x128xf32>
    %8 = arith.addf %5, %7 : vector<8x128xf32>
    %c0_6 = arith.constant 0 : index
    %c0_7 = arith.constant 0 : index
    %9 = vector.load %arg6[%c0_6, %c0_7] : memref<8x128xf32, #tpu.memory_space<vmem>>, vector<8x128xf32>
    tpu.vector_store %arg6[%c0_6, %c0_7], %8 {strides = array<i32>} : memref<8x128xf32, #tpu.memory_space<vmem>>, vector<8x128xf32>,
    return
  }
  func.func @transform_0(%arg0: i32) -> (i32, i32) {
    %c0_i32 = arith.constant 0 : i32
    %c0_i32_0 = arith.constant 0 : i32
    %c0_i32_1 = arith.constant 0 : i32
    return %c0_i32, %c0_i32_0 : i32, i32
  }
  func.func @transform_1(%arg0: i32) -> (i32, i32) {
    %c0_i32 = arith.constant 0 : i32
    %c0_i32_0 = arith.constant 0 : i32
    %c0_i32_1 = arith.constant 0 : i32
    return %c0_i32, %c0_i32_0 : i32, i32
  }
  func.func @transform_2(%arg0: i32) -> (i32, i32) {
    %c0_i32 = arith.constant 0 : i32
    %c0_i32_0 = arith.constant 0 : i32
    %c0_i32_1 = arith.constant 0 : i32
    return %c0_i32, %c0_i32_0 : i32, i32
  }
  func.func @transform_3(%arg0: i32) -> (i32, i32) {
    %c0_i32 = arith.constant 0 : i32
    %c0_i32_0 = arith.constant 0 : i32
    return %c0_i32, %arg0 : i32, i32
  }
  func.func @transform_4(%arg0: i32) -> (i32, i32) {
    %c0_i32 = arith.constant 0 : i32
    %c0_i32_0 = arith.constant 0 : i32
    return %c0_i32, %arg0 : i32, i32
  }
  func.func @transform_5(%arg0: i32) -> (i32, i32) {
    %c0_i32 = arith.constant 0 : i32
    %c0_i32_0 = arith.constant 0 : i32
    return %c0_i32, %arg0 : i32, i32
  }
}

</mosaic_0001>

<llo_original>
// kernel: language_model_lstm_forward.1
$region0: #{language_model_lstm_forward.1}
  #allocation0 [shape = 'u32[]', space=smem, size = 0x4, offset = 0x4, fixed_abs, tag = 'smem constant byte address 0x4 - core index']
  #allocation1 [shape = 'u32[72,128]{1,0:T(1,128)}', space=vmem, size = 0x9000, scoped, tag = 'internal scratch']
  #allocation2 [shape = 'bf16[8,128]{1,0:T(8,128)(2,1)}', space=vmem, size = 0x800, scoped, tag = 'scratch operand']
  %s0 = inlined_call_operand.vmem [shape: bf16[8,128], index: 0, kind: input, shape index: {}]
  %s1 = inlined_call_operand.hbm [shape: bf16[128,384], index: 1, kind: input, shape index: {}]
  %s2 = inlined_call_operand.vmem [shape: f32[1,384], index: 2, kind: input, shape index: {}]
  %s3 = inlined_call_operand.hbm [shape: bf16[128,256], index: 3, kind: input, shape index: {}]
  %s4 = inlined_call_operand.vmem [shape: f32[1,256], index: 4, kind: input, shape index: {}]
  %s5 = inlined_call_operand.hbm [shape: f32[8,256], index: 5, kind: output, shape index: {}]
  %s6 = sld [smem:[#allocation0]]
  $region65: #{language_model_lstm_forward.1} parent=0
    _
  %s8 = ssub.s32 1, %s6
  %s9 = scalar_select 0, %s8, %s6
  $region1: #{language_model_lstm_forward.1} parent=0
    #allocation3 [shape = 'u8[98304]{0}', space=vmem, size = 0x18000, scoped, tag = 'input window, operand 1, single buffered']
    #allocation4 [shape = 's32[2]{0}', space=sflag, size = 0x8, scoped, tag = 'scoped memory for language_model_lstm_forward.1']
    #allocation5 [shape = 's32[2]{0}', space=sflag, size = 0x8, scoped, tag = 'scoped memory for language_model_lstm_forward.1']
    #allocation6 [shape = 'u8[65536]{0}', space=vmem, size = 0x10000, scoped, tag = 'input window, operand 3']
    #allocation7 [shape = 's32[2]{0}', space=sflag, size = 0x8, scoped, tag = 'scoped memory for language_model_lstm_forward.1']
    #allocation8 [shape = 'u8[8192]{0}', space=vmem, size = 0x2000, scoped, tag = 'output window, operand 0']
    %10 = vsyncpa [#allocation4], 0
    %11 = vsyncpa [#allocation7], 0
    %s12 = scalar_lea.sflag [#allocation7], 1
    %13 = vsyncpa %s12, 0
    %14 = vsyncpa [#allocation5], 0
    %s15 = scalar_lea.sflag [#allocation5], 1
    %16 = vsyncpa %s15, 0
    loop: start=0, step=1, limit=4
    $region2: #{language_model_lstm_forward.1} parent=1 // loop_pre_header
      _
    $region3: #{language_model_lstm_forward.1} parent=1 // loop_header
      %s18 = sphi 0, %s22
      %p19 = scmp.ge.s32.totalorder %s18, 4
      %s26 = sphi 0, %s26
      %s28 = sphi 0, %s26
      %s29 = sphi 0, %s28
      %s43 = sphi 0, %s29
      %s47 = sphi 0, %s47
      %s49 = sphi 0, %s47
      %s50 = sphi 0, %s49
      %s64 = sphi 0, %s50
      %s68 = sphi 0, %s68
      %s70 = sphi 0, %s68
      %s71 = sphi 0, %s70
      %s85 = sphi 0, %s71
      %s91 = sphi 0, %s93
      %s94 = sphi 0, %s91
      %s95 = sphi 0, %s94
      %s111 = sphi 0, %s95
      %s117 = sphi 0, %s119
      %s120 = sphi 0, %s117
      %s121 = sphi 0, %s120
      %s137 = sphi 0, %s121
      %s143 = sphi 0, %s145
      %s146 = sphi 0, %s143
      %s147 = sphi 0, %s146
      %s163 = sphi 0, %s147
    $region4: #{language_model_lstm_forward.1} parent=1 // loop_header_branch
      %21 = sbr.rel (%p19) target = $region8
    $region5: #{language_model_lstm_forward.1} parent=1 // loop_body
      %s23 = ssub.s32 %s18, 1
      %s24 = ssub.s32 %s18, 2
      %s25 = sadd.s32 %s18, 1
      %s27 = sadd.s32 %s26, 1
      %p30 = scmp.eq.s32.totalorder %s18, 1
      %p31 = scmp.ne.s32.totalorder %s26, %s28
      %p32 = scmp.eq.s32.totalorder %s18, 0
      %p33 = por %p31, %p32
      %p34 = scmp.ne.s32.totalorder %s26, %s28
      %p35 = scmp.eq.s32.totalorder %s23, 1
      %p36 = por %p34, %p35
      %p37 = scmp.ne.s32.totalorder %s28, %s29
      %p38 = scmp.eq.s32.totalorder %s23, 0
      %p39 = por %p37, %p38
      %p40 = scmp.ne.s32.totalorder %s28, %s29
      %p41 = scmp.eq.s32.totalorder %s24, 1
      %p42 = por %p40, %p41
      %p44 = scmp.ne.s32.totalorder %s29, %s43
      %p45 = scmp.eq.s32.totalorder %s24, 0
      %p46 = por %p44, %p45
      %s48 = sadd.s32 %s47, 1
      %p51 = scmp.eq.s32.totalorder %s18, 1
      %p52 = scmp.ne.s32.totalorder %s47, %s49
      %p53 = scmp.eq.s32.totalorder %s18, 0
      %p54 = por %p52, %p53
      %p55 = scmp.ne.s32.totalorder %s47, %s49
      %p56 = scmp.eq.s32.totalorder %s23, 1
      %p57 = por %p55, %p56
      %p58 = scmp.ne.s32.totalorder %s49, %s50
      %p59 = scmp.eq.s32.totalorder %s23, 0
      %p60 = por %p58, %p59
      %p61 = scmp.ne.s32.totalorder %s49, %s50
      %p62 = scmp.eq.s32.totalorder %s24, 1
      %p63 = por %p61, %p62
      %p65 = scmp.ne.s32.totalorder %s50, %s64
      %p66 = scmp.eq.s32.totalorder %s24, 0
      %p67 = por %p65, %p66
      %s69 = sadd.s32 %s68, 1
      %p72 = scmp.eq.s32.totalorder %s18, 1
      %p73 = scmp.ne.s32.totalorder %s68, %s70
      %p74 = scmp.eq.s32.totalorder %s18, 0
      %p75 = por %p73, %p74
      %p76 = scmp.ne.s32.totalorder %s68, %s70
      %p77 = scmp.eq.s32.totalorder %s23, 1
      %p78 = por %p76, %p77
      %p79 = scmp.ne.s32.totalorder %s70, %s71
      %p80 = scmp.eq.s32.totalorder %s23, 0
      %p81 = por %p79, %p80
      %p82 = scmp.ne.s32.totalorder %s70, %s71
      %p83 = scmp.eq.s32.totalorder %s24, 1
      %p84 = por %p82, %p83
      %p86 = scmp.ne.s32.totalorder %s71, %s85
      %p87 = scmp.eq.s32.totalorder %s24, 0
      %p88 = por %p86, %p87
      %s89 = ssub.s32 %s18, %s25
      %p90 = scmp.eq.s32.totalorder %s89, 0
      %s92 = sadd.s32 %s91, 1
      %s93 = scalar_select %p90, %s91, %s92
      %p96 = pneg %p90
      %p97 = scmp.eq.s32.totalorder %s18, 1
      %p98 = por %p96, %p97
      %p99 = scmp.ne.s32.totalorder %s91, %s94
      %p100 = scmp.eq.s32.totalorder %s18, 0
      %p101 = por %p99, %p100
      %p102 = scmp.ne.s32.totalorder %s91, %s94
      %p103 = scmp.eq.s32.totalorder %s23, 1
      %p104 = por %p102, %p103
      %p105 = scmp.ne.s32.totalorder %s94, %s95
      %p106 = scmp.eq.s32.totalorder %s23, 0
      %p107 = por %p105, %p106
      %p108 = scmp.ne.s32.totalorder %s94, %s95
      %p109 = scmp.eq.s32.totalorder %s24, 1
      %p110 = por %p108, %p109
      %p112 = scmp.ne.s32.totalorder %s95, %s111
      %p113 = scmp.eq.s32.totalorder %s24, 0
      %p114 = por %p112, %p113
      %s115 = ssub.s32 %s18, %s25
      %p116 = scmp.eq.s32.totalorder %s115, 0
      %s118 = sadd.s32 %s117, 1
      %s119 = scalar_select %p116, %s117, %s118
      %p122 = pneg %p116
      %p123 = scmp.eq.s32.totalorder %s18, 1
      %p124 = por %p122, %p123
      %p125 = scmp.ne.s32.totalorder %s117, %s120
      %p126 = scmp.eq.s32.totalorder %s18, 0
      %p127 = por %p125, %p126
      %p128 = scmp.ne.s32.totalorder %s117, %s120
      %p129 = scmp.eq.s32.totalorder %s23, 1
      %p130 = por %p128, %p129
      %p131 = scmp.ne.s32.totalorder %s120, %s121
      %p132 = scmp.eq.s32.totalorder %s23, 0
      %p133 = por %p131, %p132
      %p134 = scmp.ne.s32.totalorder %s120, %s121
      %p135 = scmp.eq.s32.totalorder %s24, 1
      %p136 = por %p134, %p135
      %p138 = scmp.ne.s32.totalorder %s121, %s137
      %p139 = scmp.eq.s32.totalorder %s24, 0
      %p140 = por %p138, %p139
      %s141 = ssub.s32 %s18, %s25
      %p142 = scmp.eq.s32.totalorder %s141, 0
      %s144 = sadd.s32 %s143, 1
      %s145 = scalar_select %p142, %s143, %s144
      %p148 = pneg %p142
      %p149 = scmp.eq.s32.totalorder %s18, 1
      %p150 = por %p148, %p149
      %p151 = scmp.ne.s32.totalorder %s143, %s146
      %p152 = scmp.eq.s32.totalorder %s18, 0
      %p153 = por %p151, %p152
      %p154 = scmp.ne.s32.totalorder %s143, %s146
      %p155 = scmp.eq.s32.totalorder %s23, 1
      %p156 = por %p154, %p155
      %p157 = scmp.ne.s32.totalorder %s146, %s147
      %p158 = scmp.eq.s32.totalorder %s23, 0
      %p159 = por %p157, %p158
      %p160 = scmp.ne.s32.totalorder %s146, %s147
      %p161 = scmp.eq.s32.totalorder %s24, 1
      %p162 = por %p160, %p161
      %p164 = scmp.ne.s32.totalorder %s147, %s163
      %p165 = scmp.eq.s32.totalorder %s24, 0
      %p166 = por %p164, %p165
      %p167 = scmp.le.s32.totalorder 1, %s18
      %p168 = scmp.lt.s32.totalorder %s18, 3
      %p169 = pnand %p167, %p168
      %p170 = pneg %p169
      // Predicated region
      $region9: #{language_model_lstm_forward.1} parent=5 // pred_check
        _
      $region10: #{language_model_lstm_forward.1} parent=5 // pred_check_branch
        %172 = sbr.rel (%p169) target = $region12
      $region11: #{language_model_lstm_forward.1} parent=5 // pred_region
        %s173 = ssub.s32 %s18, 1
        // Predicated region
        $region13: #{language_model_lstm_forward.1} parent=11 // pred_check
          %p174 = pneg %p39
        $region14: #{language_model_lstm_forward.1} parent=11 // pred_check_branch
          %176 = sbr.rel (%p174) target = $region16
        $region15: #{language_model_lstm_forward.1} parent=11 // pred_region
          _
        $region16: #{language_model_lstm_forward.1} parent=11 // pred_fallthru
          _
        // Predicated region
        $region17: #{language_model_lstm_forward.1} parent=11 // pred_check
          %p177 = pneg %p60
        $region18: #{language_model_lstm_forward.1} parent=11 // pred_check_branch
          %179 = sbr.rel (%p177) target = $region20
        $region19: #{language_model_lstm_forward.1} parent=11 // pred_region
          %181 = vsyncadd [#allocation4], 0
          %s182 = sshll.u32 %s1, 4
          %s183 = int_to_ptr.hbm [resolvable:$true] %s182
          %s184 = sshll.u32 [#allocation3], 4
          %s185 = int_to_ptr.vmem [resolvable:$true] %s184
          %190 = dma.hbm_to_vmem [thread:$0]  %s183, 3072, %s185, [#allocation4], 192, 192, 12
        $region20: #{language_model_lstm_forward.1} parent=11 // pred_fallthru
          _
        // Predicated region
        $region21: #{language_model_lstm_forward.1} parent=11 // pred_check
          %p191 = pneg %p81
        $region22: #{language_model_lstm_forward.1} parent=11 // pred_check_branch
          %193 = sbr.rel (%p191) target = $region24
        $region23: #{language_model_lstm_forward.1} parent=11 // pred_region
          _
        $region24: #{language_model_lstm_forward.1} parent=11 // pred_fallthru
          _
      $region12: #{language_model_lstm_forward.1} parent=5 // pred_fallthru
        _
      %p194 = scmp.lt.s32.totalorder %s18, 2
      // Predicated region
      $region25: #{language_model_lstm_forward.1} parent=5 // pred_check
        %p195 = pneg %p194
      $region26: #{language_model_lstm_forward.1} parent=5 // pred_check_branch
        %197 = sbr.rel (%p195) target = $region28
      $region27: #{language_model_lstm_forward.1} parent=5 // pred_region
        // Predicated region
        $region29: #{language_model_lstm_forward.1} parent=27 // pred_check
          %p198 = pneg %p101
        $region30: #{language_model_lstm_forward.1} parent=27 // pred_check_branch
          %200 = sbr.rel (%p198) target = $region32
        $region31: #{language_model_lstm_forward.1} parent=27 // pred_region
          %s201 = sand.u32 %s91, 1
          %s202 = scalar_lea.sflag [#allocation7], %s201
          %s203 = sand.u32 %s91, 1
          %s204 = smul.addr %s203, 64
          %s205 = scalar_lea.vmem [#allocation6], %s204
          %207 = vsyncadd %s202, 0
          %s208 = smul.addr %s18, 4
          %s209 = scalar_lea.hbm %s3, %s208
          %s210 = sshll.u32 %s209, 4
          %s211 = int_to_ptr.hbm [resolvable:$true] %s210
          %s212 = sshll.u32 %s205, 4
          %s213 = int_to_ptr.vmem [resolvable:$true] %s212
          %218 = dma.hbm_to_vmem [thread:$0]  %s211, 1024, %s213, %s202, 128, 64, 4
        $region32: #{language_model_lstm_forward.1} parent=27 // pred_fallthru
          _
        // Predicated region
        $region33: #{language_model_lstm_forward.1} parent=27 // pred_check
          %p219 = pneg %p127
        $region34: #{language_model_lstm_forward.1} parent=27 // pred_check_branch
          %221 = sbr.rel (%p219) target = $region36
        $region35: #{language_model_lstm_forward.1} parent=27 // pred_region
          %p222 = scmp.lt.s32.totalorder %s18, 1
          %s223 = scalar_select %p222, %s18, 1
          %s224 = scalar_lea.vmem %s4, %s223
        $region36: #{language_model_lstm_forward.1} parent=27 // pred_fallthru
          _
      $region28: #{language_model_lstm_forward.1} parent=5 // pred_fallthru
        _
      %p225 = scmp.le.s32.totalorder 1, %s18
      %p226 = scmp.lt.s32.totalorder %s18, 3
      %p227 = pnand %p225, %p226
      %p228 = pneg %p227
      // Predicated region
      $region37: #{language_model_lstm_forward.1} parent=5 // pred_check
        _
      $region38: #{language_model_lstm_forward.1} parent=5 // pred_check_branch
        %230 = sbr.rel (%p227) target = $region40
      $region39: #{language_model_lstm_forward.1} parent=5 // pred_region
        %s231 = ssub.s32 %s18, 1
        // Predicated region
        $region41: #{language_model_lstm_forward.1} parent=39 // pred_check
          %p232 = pneg %p60
        $region42: #{language_model_lstm_forward.1} parent=39 // pred_check_branch
          %234 = sbr.rel (%p232) target = $region44
        $region43: #{language_model_lstm_forward.1} parent=39 // pred_region
          %236 = dma.done [#allocation4], 3072
        $region44: #{language_model_lstm_forward.1} parent=39 // pred_fallthru
          _
        %s237 = sand.u32 %s94, 1
        %s238 = scalar_lea.sflag [#allocation7], %s237
        %s239 = sand.u32 %s94, 1
        %s240 = smul.addr %s239, 64
        %s241 = scalar_lea.vmem [#allocation6], %s240
        // Predicated region
        $region45: #{language_model_lstm_forward.1} parent=39 // pred_check
          %p242 = pneg %p107
        $region46: #{language_model_lstm_forward.1} parent=39 // pred_check_branch
          %244 = sbr.rel (%p242) target = $region48
        $region47: #{language_model_lstm_forward.1} parent=39 // pred_region
          %246 = dma.done %s238, 1024
        $region48: #{language_model_lstm_forward.1} parent=39 // pred_fallthru
          _
        %p247 = pneg %p39
        %p248 = pneg %p36
        %p249 = pneg %p60
        %p250 = pneg %p57
        %p251 = pneg %p81
        %p252 = pneg %p78
        %s253 = sand.u32 %s94, 1
        %s254 = scalar_lea.sflag [#allocation7], %s253
        %s255 = sand.u32 %s94, 1
        %s256 = smul.addr %s255, 64
        %s257 = scalar_lea.vmem [#allocation6], %s256
        %p258 = pneg %p107
        %p259 = pneg %p104
        %p260 = scmp.lt.s32.totalorder %s23, 1
        %s261 = scalar_select %p260, %s23, 1
        %s262 = scalar_lea.vmem %s4, %s261
        %p263 = pneg %p133
        %p264 = pneg %p130
        %p265 = pneg %p159
        %p266 = pneg %p156
        %s267 = sand.u32 %s146, 1
        %s268 = scalar_lea.sflag [#allocation5], %s267
        %s269 = sand.u32 %s146, 1
        %s270 = smul.addr %s269, 8
        %s271 = scalar_lea.vmem [#allocation8], %s270
        %p272 = scmp.lt.s32.totalorder %s23, 1
        %s273 = scalar_select %p272, %s23, 1
        %s274 = scalar_lea.vmem %s4, %s273
        %p275 = scmp.eq.s32.totalorder %s23, 0
        // Predicated region
        $region49: #{language_model_lstm_forward.1} parent=39 // pred_check
          %p276 = pneg %p275
        $region50: #{language_model_lstm_forward.1} parent=39 // pred_check_branch
          %278 = sbr.rel (%p276) target = $region52
        $region51: #{language_model_lstm_forward.1} parent=39 // pred_region
          %v279 = vld [vmem:[%s0] sm:$0xf]
          %v280 = vld [vmem:[#allocation3] sm:$0xff]
          %v281 = vld [vmem:[#allocation3 + $0x8] sm:$0xf]
          %v282 = vld [vmem:[#allocation3 + $0xc] sm:$0xff]
          %v283 = vld [vmem:[#allocation3 + $0x14] sm:$0xf]
          %v284 = vld [vmem:[#allocation3 + $0x18] sm:$0xff]
          %v285 = vld [vmem:[#allocation3 + $0x20] sm:$0xf]
          %v286 = vld [vmem:[#allocation3 + $0x24] sm:$0xff]
          %v287 = vld [vmem:[#allocation3 + $0x2c] sm:$0xf]
          %v288 = vld [vmem:[#allocation3 + $0x30] sm:$0xff]
          %v289 = vld [vmem:[#allocation3 + $0x38] sm:$0xf]
          %v290 = vld [vmem:[#allocation3 + $0x3c] sm:$0xff]
          %v291 = vld [vmem:[#allocation3 + $0x44] sm:$0xf]
          %v292 = vld [vmem:[#allocation3 + $0x48] sm:$0xff]
          %v293 = vld [vmem:[#allocation3 + $0x50] sm:$0xf]
          %v294 = vld [vmem:[#allocation3 + $0x54] sm:$0xff]
          %v295 = vld [vmem:[#allocation3 + $0x5c] sm:$0xf]
          %v296 = vld [vmem:[#allocation3 + $0x60] sm:$0xff]
          %v297 = vld [vmem:[#allocation3 + $0x68] sm:$0xf]
          %v298 = vld [vmem:[#allocation3 + $0x6c] sm:$0xff]
          %v299 = vld [vmem:[#allocation3 + $0x74] sm:$0xf]
          %v300 = vld [vmem:[#allocation3 + $0x78] sm:$0xff]
          %v301 = vld [vmem:[#allocation3 + $0x80] sm:$0xf]
          %v302 = vld [vmem:[#allocation3 + $0x84] sm:$0xff]
          %v303 = vld [vmem:[#allocation3 + $0x8c] sm:$0xf]
          %v304 = vld [vmem:[#allocation3 + $0x90] sm:$0xff]
          %v305 = vld [vmem:[#allocation3 + $0x98] sm:$0xf]
          %v306 = vld [vmem:[#allocation3 + $0x9c] sm:$0xff]
          %v307 = vld [vmem:[#allocation3 + $0xa4] sm:$0xf]
          %v308 = vld [vmem:[#allocation3 + $0xa8] sm:$0xff]
          %v309 = vld [vmem:[#allocation3 + $0xb0] sm:$0xf]
          %v310 = vld [vmem:[#allocation3 + $0xb4] sm:$0xff]
          %v311 = vld [vmem:[#allocation3 + $0xbc] sm:$0xf]
          %v312 = vld [vmem:[%s2] sm:$0x7]
          %v314 = vperm.slane %v312, 0
          %v315 = vperm.slane %v312, 1
          %v316 = vperm.slane %v312, 2
          %v352 = vunpack.c.l.b16 %v280
          %v353 = vunpack.c.h.b16 %v280
          %v354 = vunpack.c.l.b16 %v281
          %v355 = vunpack.c.l.b16 %v282
          %v356 = vunpack.c.h.b16 %v282
          %v357 = vunpack.c.l.b16 %v283
          %v358 = vunpack.c.l.b16 %v284
          %v359 = vunpack.c.h.b16 %v284
          %v360 = vunpack.c.l.b16 %v285
          %v361 = vunpack.c.l.b16 %v286
          %v362 = vunpack.c.h.b16 %v286
          %v363 = vunpack.c.l.b16 %v287
          %v364 = vunpack.c.l.b16 %v288
          %v365 = vunpack.c.h.b16 %v288
          %v366 = vunpack.c.l.b16 %v289
          %v367 = vunpack.c.l.b16 %v290
          %v368 = vunpack.c.h.b16 %v290
          %v369 = vunpack.c.l.b16 %v291
          %v370 = vunpack.c.l.b16 %v292
          %v371 = vunpack.c.h.b16 %v292
          %v372 = vunpack.c.l.b16 %v293
          %v373 = vunpack.c.l.b16 %v294
          %v374 = vunpack.c.h.b16 %v294
          %v375 = vunpack.c.l.b16 %v295
          %v376 = vunpack.c.l.b16 %v296
          %v377 = vunpack.c.h.b16 %v296
          %v378 = vunpack.c.l.b16 %v297
          %v379 = vunpack.c.l.b16 %v298
          %v380 = vunpack.c.h.b16 %v298
          %v381 = vunpack.c.l.b16 %v299
          %v382 = vunpack.c.l.b16 %v300
          %v383 = vunpack.c.h.b16 %v300
          %v384 = vunpack.c.l.b16 %v301
          %v385 = vunpack.c.l.b16 %v302
          %v386 = vunpack.c.h.b16 %v302
          %v387 = vunpack.c.l.b16 %v303
          %v388 = vunpack.c.l.b16 %v304
          %v389 = vunpack.c.h.b16 %v304
          %v390 = vunpack.c.l.b16 %v305
          %v391 = vunpack.c.l.b16 %v306
          %v392 = vunpack.c.h.b16 %v306
          %v393 = vunpack.c.l.b16 %v307
          %v394 = vunpack.c.l.b16 %v308
          %v395 = vunpack.c.h.b16 %v308
          %v396 = vunpack.c.l.b16 %v309
          %v397 = vunpack.c.l.b16 %v310
          %v398 = vunpack.c.h.b16 %v310
          %v399 = vunpack.c.l.b16 %v311
          %v400 = vpack.c.b16 %v355, %v352
          %v401 = vpack.c.b16 %v356, %v353
          %v402 = vpack.c.b16 %v357, %v354
          %v403 = vpack.c.b16 %v361, %v358
          %v404 = vpack.c.b16 %v362, %v359
          %v405 = vpack.c.b16 %v363, %v360
          %v406 = vpack.c.b16 %v367, %v364
          %v407 = vpack.c.b16 %v368, %v365
          %v408 = vpack.c.b16 %v369, %v366
          %v409 = vpack.c.b16 %v373, %v370
          %v410 = vpack.c.b16 %v374, %v371
          %v411 = vpack.c.b16 %v375, %v372
          %v412 = vpack.c.b16 %v379, %v376
          %v413 = vpack.c.b16 %v380, %v377
          %v414 = vpack.c.b16 %v381, %v378
          %v415 = vpack.c.b16 %v385, %v382
          %v416 = vpack.c.b16 %v386, %v383
          %v417 = vpack.c.b16 %v387, %v384
          %v418 = vpack.c.b16 %v391, %v388
          %v419 = vpack.c.b16 %v392, %v389
          %v420 = vpack.c.b16 %v393, %v390
          %v421 = vpack.c.b16 %v397, %v394
          %v422 = vpack.c.b16 %v398, %v395
          %v423 = vpack.c.b16 %v399, %v396
          %448 = vmatpush.bf16.msra.mxu0 %v421
          %449 = vmatpush.bf16.msra.mxu0 %v418
          %450 = vmatpush.bf16.msra.mxu0 %v415
          %451 = vmatpush.bf16.msra.mxu0 %v412
          %452 = vmatpush.bf16.msra.mxu0 %v409
          %453 = vmatpush.bf16.msra.mxu0 %v406
          %454 = vmatpush.bf16.msra.mxu0 %v403
          %455 = vmatpush.bf16.msra.mxu0 %v400
          %456 = vmatmul.bf16.gmra.mxu0 %v279
          %v457 = vpop.f32.mrf.mxu0
          %v458 = vadd.f32 %v314, %v457
          %v459 = vpop.f32.mrf.mxu0
          %460 = vdwg.mxu0
          %461 = vmatpush.bf16.msra.mxu0 %v422
          %462 = vmatpush.bf16.msra.mxu0 %v419
          %463 = vmatpush.bf16.msra.mxu0 %v416
          %464 = vmatpush.bf16.msra.mxu0 %v413
          %465 = vmatpush.bf16.msra.mxu0 %v410
          %466 = vmatpush.bf16.msra.mxu0 %v407
          %467 = vmatpush.bf16.msra.mxu0 %v404
          %468 = vmatpush.bf16.msra.mxu0 %v401
          %469 = vmatmul.bf16.gmra.mxu0 %v279
          %v470 = vpop.f32.mrf.mxu0
          %v471 = vadd.f32 %v315, %v470
          %v472 = vpop.f32.mrf.mxu0
          %473 = vdwg.mxu0
          %474 = vmatpush.bf16.msra.mxu0 %v423
          %475 = vmatpush.bf16.msra.mxu0 %v420
          %476 = vmatpush.bf16.msra.mxu0 %v417
          %477 = vmatpush.bf16.msra.mxu0 %v414
          %478 = vmatpush.bf16.msra.mxu0 %v411
          %479 = vmatpush.bf16.msra.mxu0 %v408
          %480 = vmatpush.bf16.msra.mxu0 %v405
          %481 = vmatpush.bf16.msra.mxu0 %v402
          %482 = vmatmul.bf16.gmra.mxu0 %v279
          %v483 = vpop.f32.mrf.mxu0
          %v484 = vadd.f32 %v316, %v483
          %v485 = vpop.f32.mrf.mxu0
          %486 = vdwg.mxu0
          %v487 = vxor.u32 %v458, 2147483648
          %v488 = vmul.f32 %v487, 1.442695
          %v489 = vpow.pop %v488
          %v490 = vadd.f32 %v489, 1.0
          %v491 = vrcp.pop %v490
          %v492 = vmul.f32 %v490, %v491
          %v493 = vsub.f32 1.0, %v492
          %v494 = vmul.f32 %v491, %v493
          %v495 = vadd.f32 %v491, %v494
          %vm496 = vweird.f32 %v490
          %vm497 = vweird.f32 %v491
          %vm498 = vmor %vm496, %vm497
          %v499 = vsel %vm498, %v491, %v495
          %v500 = vand.u32 2147483647, %v490
          %vm501 = vcmp.eq.f32.partialorder %v500, 8.507059e+37
          %v502 = vand.u32 %v490, 2147483648
          %v503 = vor.u32 1.1754944e-38, %v502
          %v504 = vsel %vm501, %v503, %v499
          %v505 = vmul.f32 1.0, %v504
          %v506 = vtanh.pop %v471
          %v507 = vxor.u32 %v484, 2147483648
          %v508 = vmul.f32 %v507, 1.442695
          %v509 = vpow.pop %v508
          %v510 = vadd.f32 %v509, 1.0
          %v511 = vrcp.pop %v510
          %v512 = vmul.f32 %v510, %v511
          %v513 = vsub.f32 1.0, %v512
          %v514 = vmul.f32 %v511, %v513
          %v515 = vadd.f32 %v511, %v514
          %vm516 = vweird.f32 %v510
          %vm517 = vweird.f32 %v511
          %vm518 = vmor %vm516, %vm517
          %v519 = vsel %vm518, %v511, %v515
          %v520 = vand.u32 2147483647, %v510
          %vm521 = vcmp.eq.f32.partialorder %v520, 8.507059e+37
          %v522 = vand.u32 %v510, 2147483648
          %v523 = vor.u32 1.1754944e-38, %v522
          %v524 = vsel %vm521, %v523, %v519
          %v525 = vmul.f32 1.0, %v524
          %v526 = vmul.f32 %v505, %v506
          %v527 = vtanh.pop %v526
          %v528 = vmul.f32 %v525, %v527
          %v529 = vpack.c.bf16 %v528, %v528
          %530 = vst [vmem:[#allocation2] sm:$0xf] %v529
        $region52: #{language_model_lstm_forward.1} parent=39 // pred_fallthru
          _
        %v531 = vld [vmem:[#allocation2] sm:$0xf]
        %v532 = vld [vmem:[%s241] sm:$0xf]
        %v533 = vld [vmem:[%s241 + $0x4] sm:$0xf]
        %v534 = vld [vmem:[%s241 + $0x8] sm:$0xf]
        %v535 = vld [vmem:[%s241 + $0xc] sm:$0xf]
        %v536 = vld [vmem:[%s241 + $0x10] sm:$0xf]
        %v537 = vld [vmem:[%s241 + $0x14] sm:$0xf]
        %v538 = vld [vmem:[%s241 + $0x18] sm:$0xf]
        %v539 = vld [vmem:[%s241 + $0x1c] sm:$0xf]
        %v540 = vld [vmem:[%s241 + $0x20] sm:$0xf]
        %v541 = vld [vmem:[%s241 + $0x24] sm:$0xf]
        %v542 = vld [vmem:[%s241 + $0x28] sm:$0xf]
        %v543 = vld [vmem:[%s241 + $0x2c] sm:$0xf]
        %v544 = vld [vmem:[%s241 + $0x30] sm:$0xf]
        %v545 = vld [vmem:[%s241 + $0x34] sm:$0xf]
        %v546 = vld [vmem:[%s241 + $0x38] sm:$0xf]
        %v547 = vld [vmem:[%s241 + $0x3c] sm:$0xf]
        %v548 = vld [vmem:[%s274] sm:$0x1]
        %v550 = vperm.slane %v548, 0
        %v568 = vunpack.c.l.b16 %v532
        %v569 = vunpack.c.l.b16 %v533
        %v570 = vunpack.c.l.b16 %v534
        %v571 = vunpack.c.l.b16 %v535
        %v572 = vunpack.c.l.b16 %v536
        %v573 = vunpack.c.l.b16 %v537
        %v574 = vunpack.c.l.b16 %v538
        %v575 = vunpack.c.l.b16 %v539
        %v576 = vunpack.c.l.b16 %v540
        %v577 = vunpack.c.l.b16 %v541
        %v578 = vunpack.c.l.b16 %v542
        %v579 = vunpack.c.l.b16 %v543
        %v580 = vunpack.c.l.b16 %v544
        %v581 = vunpack.c.l.b16 %v545
        %v582 = vunpack.c.l.b16 %v546
        %v583 = vunpack.c.l.b16 %v547
        %v584 = vpack.c.b16 %v569, %v568
        %v585 = vpack.c.b16 %v571, %v570
        %v586 = vpack.c.b16 %v573, %v572
        %v587 = vpack.c.b16 %v575, %v574
        %v588 = vpack.c.b16 %v577, %v576
        %v589 = vpack.c.b16 %v579, %v578
        %v590 = vpack.c.b16 %v581, %v580
        %v591 = vpack.c.b16 %v583, %v582
        %600 = vmatpush.bf16.msra.mxu0 %v591
        %601 = vmatpush.bf16.msra.mxu0 %v590
        %602 = vmatpush.bf16.msra.mxu0 %v589
        %603 = vmatpush.bf16.msra.mxu0 %v588
        %604 = vmatpush.bf16.msra.mxu0 %v587
        %605 = vmatpush.bf16.msra.mxu0 %v586
        %606 = vmatpush.bf16.msra.mxu0 %v585
        %607 = vmatpush.bf16.msra.mxu0 %v584
        %608 = vmatmul.bf16.gmra.mxu0 %v531
        %v609 = vpop.f32.mrf.mxu0
        %v610 = vadd.f32 %v550, %v609
        %v611 = vpop.f32.mrf.mxu0
        %612 = vdwg.mxu0
        %613 = vst [vmem:[%s271] sm:$0xff] %v610
        %s614 = sand.u32 %s146, 1
        %s615 = scalar_lea.sflag [#allocation5], %s614
        %s616 = sand.u32 %s146, 1
        %s617 = smul.addr %s616, 8
        %s618 = scalar_lea.vmem [#allocation8], %s617
        // Predicated region
        $region53: #{language_model_lstm_forward.1} parent=39 // pred_check
          %p619 = pneg %p156
        $region54: #{language_model_lstm_forward.1} parent=39 // pred_check_branch
          %621 = sbr.rel (%p619) target = $region56
        $region55: #{language_model_lstm_forward.1} parent=39 // pred_region
          %623 = vsyncadd %s615, 0
          %s624 = smul.addr %s23, 8
          %s625 = scalar_lea.hbm %s5, %s624
          %s627 = sshll.u32 %s618, 4
          %s628 = int_to_ptr.vmem [resolvable:$true] %s627
          %s629 = sshll.u32 %s625, 4
          %s630 = int_to_ptr.hbm [resolvable:$true] %s629
          %632 = dma.vmem_to_hbm [thread:$0]  %s628, 128, %s630, %s615
        $region56: #{language_model_lstm_forward.1} parent=39 // pred_fallthru
          _
      $region40: #{language_model_lstm_forward.1} parent=5 // pred_fallthru
        _
      %p633 = scmp.le.s32.totalorder 2, %s18
      // Predicated region
      $region57: #{language_model_lstm_forward.1} parent=5 // pred_check
        %p634 = pneg %p633
      $region58: #{language_model_lstm_forward.1} parent=5 // pred_check_branch
        %636 = sbr.rel (%p634) target = $region60
      $region59: #{language_model_lstm_forward.1} parent=5 // pred_region
        %s637 = ssub.s32 %s18, 2
        // Predicated region
        $region61: #{language_model_lstm_forward.1} parent=59 // pred_check
          %p638 = pneg %p162
        $region62: #{language_model_lstm_forward.1} parent=59 // pred_check_branch
          %640 = sbr.rel (%p638) target = $region64
        $region63: #{language_model_lstm_forward.1} parent=59 // pred_region
          %s641 = sand.u32 %s147, 1
          %s642 = scalar_lea.sflag [#allocation5], %s641
          %s643 = sand.u32 %s147, 1
          %s644 = smul.addr %s643, 8
          %s645 = scalar_lea.vmem [#allocation8], %s644
          %647 = dma.done %s642, 128
        $region64: #{language_model_lstm_forward.1} parent=59 // pred_fallthru
          _
      $region60: #{language_model_lstm_forward.1} parent=5 // pred_fallthru
        _
    $region6: #{language_model_lstm_forward.1} parent=1 // loop_footer
      %s22 = sadd.s32 1, %s18
    $region7: #{language_model_lstm_forward.1} parent=1 // loop_footer_branch
      %17 = sbr.rel target = $region3
    $region8: #{language_model_lstm_forward.1} parent=1 // loop_exit
      _
    %648 = vsyncpa [#allocation4], 1
    %s649 = scalar_lea.sflag [#allocation4], 1
    %650 = vsyncpa %s649, 1
    %651 = vsyncpa [#allocation7], 1
    %s652 = scalar_lea.sflag [#allocation7], 1
    %653 = vsyncpa %s652, 1
    %654 = vsyncpa [#allocation5], 1
    %s655 = scalar_lea.sflag [#allocation5], 1
    %656 = vsyncpa %s655, 1

</llo_original>
